<compile_context>
chip_gen: v7x
topology: tpu7x:2x2x1
jax: 0.10.0
libtpu: 0.0.40
codegen_flags: <defaults>
</compile_context>

<pallas_src>
import jax
import jax.numpy as jnp
from jax.experimental import pallas as pl
from jax.experimental.pallas import tpu as pltpu


# --------------------------------------------------------------------------- kernel
def imagemap_kernel(scale_ref, bias_ref, img_ref, out_ref):
    # scale_ref: (1,)             SMEM  focal-plane scale s
    # bias_ref:  (BN, 1, LANES)   VMEM  per-(neighbor, lane) bias = (d - c)*s + c
    # img_ref:   (TR, LANES)      VMEM  interleaved uv image tile (block index is
    #                                   constant over the inner neighbor axis ->
    #                                   each tile DMA'd from HBM exactly once)
    # out_ref:   (BN, TR, LANES)  VMEM  int32 output block
    s = scale_ref[0]
    scaled = img_ref[...] * s                         # (TR, LANES), shared across BN
    uv = scaled[None, :, :] + bias_ref[...]           # (BN, TR, LANES)
    out_ref[...] = jnp.round(uv).astype(jnp.int32)


# --------------------------------------------------------------------------- helpers
def _divisors_desc(n):
    divs = set()
    i = 1
    while i * i <= n:
        if n % i == 0:
            divs.add(i)
            divs.add(n // i)
        i += 1
    return sorted(divs, reverse=True)


def _pick_layout(flat):
    """View the flattened (H*W*2,) image as a lane-dense (rows, lanes) slab.

    lanes is a multiple of 128 (unmasked stores) and rows >= 8 (sublane-dense).
    If no exact factorization exists, pad the flat extent (wrapper slices the
    tail off afterwards).  Returns (lanes, rows, padded_flat)."""
    for lanes in (2048, 1024, 512, 256, 128):
        if flat % lanes == 0 and flat // lanes >= 8:
            return lanes, flat // lanes, flat
    lanes = 128
    rows = max(-(-flat // lanes), 8)
    rows = -(-rows // 8) * 8
    return lanes, rows, rows * lanes


def _pick_tiles(rows, lanes, n, out_block_budget):
    """Choose (tr, bn): sublane rows and neighbors processed per grid step.

    Maximizes the int32 output block under `out_block_budget`; among fitting
    configs prefers >= 2 total grid steps with an even split along the axis
    megacore shards (outer spatial axis, or the neighbor axis when the spatial
    axis has a single step) so both v7x TensorCores get balanced work.
    tr is a divisor of rows that is a multiple of 8 (or rows itself); bn | n."""
    bytes_per_row = lanes * 4
    row_divs = [d for d in _divisors_desc(rows) if d % 8 == 0 or d == rows]
    n_divs = _divisors_desc(n)

    def score(tr, bn):
        blk = bn * tr * bytes_per_row
        s_steps, n_steps = rows // tr, n // bn
        if blk > out_block_budget:
            return (0, 0, 0, -blk)                    # over budget: smallest wins
        multi = (s_steps * n_steps) >= 2
        even = (s_steps % 2 == 0) or (s_steps == 1 and n_steps % 2 == 0)
        return (1, int(multi), int(multi and even), blk)

    best = max(((score(tr, bn), tr, bn) for tr in row_divs for bn in n_divs),
               key=lambda c: c[0])
    return best[1], best[2]


def _vmem_plan():
    """(per-step int32 output block budget, physical VMEM bytes) per generation."""
    try:
        phys = int(pltpu.get_tpu_info().vmem_capacity_bytes)
    except Exception:
        phys = 64 << 20                               # conservative (v7x-sized)
    if phys >= (100 << 20):                           # v5e / v6e: 128 MiB physical
        return 16 << 20, phys
    return 8 << 20, phys                              # v7x: 64 MiB per TensorCore


# --------------------------------------------------------------------------- wrapper
def image_map_forward(img, cam, neighbors, *, z_focal, center_pixel, f, sep,
                      eps=1e-6):
    """img: (H, W, 2) float32, cam: (3,), neighbors: (N, 2). Returns (N, H, W, 2) int32."""
    H, W, C = img.shape
    assert C == 2
    N = neighbors.shape[0]
    dtype = img.dtype

    if z_focal:  # static Python truthiness, exactly as in the PyTorch module
        disparity = (f * sep / z_focal).astype(dtype)                         # (2,)
        d = (neighbors.astype(dtype) - cam[None, :2].astype(dtype)) * disparity[None, :]
        # TODO(synk): PyTorch raises ValueError when |z_focal - cam[-1]| <= 1e-6
        # (data-dependent host-side error); not reproduced inside the kernel.
        scale = z_focal / (z_focal - cam[-1])
        scale = jnp.where(scale <= eps, jnp.zeros((), dtype), scale.astype(dtype))
        center = center_pixel.astype(dtype)
    else:
        # Falsy z_focal: output is just round(img) broadcast over neighbors.
        d = jnp.zeros((N, C), dtype=dtype)
        scale = jnp.ones((), dtype=dtype)
        center = jnp.zeros((C,), dtype=dtype)

    flat = H * W * C
    lanes, rows, padded_flat = _pick_layout(flat)
    out_budget, phys_vmem = _vmem_plan()
    tr, bn = _pick_tiles(rows, lanes, N, out_budget)

    # Lane-dense flattened image: row-major bytes of (H, W, 2) interleave u/v along
    # the lane axis; pad the tail so stores are never lane/sublane masked.
    img_flat = img.reshape(-1)
    if padded_flat != flat:
        img_flat = jnp.pad(img_flat, (0, padded_flat - flat))
    img_rl = img_flat.reshape(rows, lanes)

    # Fold the affine into a per-(neighbor, lane) bias once in the wrapper
    # (O(N*lanes), negligible):  out = round(img*s + bias),  bias = (d - c)*s + c.
    # NOTE: FP op order differs from PyTorch's ((img + d) - c)*s + c; results can
    # differ by 1 only at exact .5 rounding ties.
    ch = jnp.arange(lanes) % 2                        # lane parity -> uv channel
    d_lane = jnp.take(d, ch, axis=1)                  # (N, lanes)
    c_lane = jnp.take(center, ch, axis=0)             # (lanes,)
    bias = ((d_lane - c_lane[None, :]) * scale + c_lane[None, :]).reshape(N, 1, lanes)
    scale1 = scale.reshape(1)

    grid = (rows // tr, N // bn)    # spatial OUTER, neighbors INNER (img tile resident)

    # Double-buffered VMEM accounting: 2x(out + img + bias) blocks plus one
    # output-sized f32 intermediate and headroom; clamped generation-aware.
    out_blk = bn * tr * lanes * 4
    img_blk = tr * lanes * 4
    bias_blk = bn * lanes * 4
    vmem_limit = 3 * out_blk + 2 * img_blk + 2 * bias_blk + (4 << 20)
    vmem_limit = int(min(max(vmem_limit, 32 << 20), (phys_vmem * 3) // 4))

    cost = pl.CostEstimate(
        flops=3 * N * rows * lanes,
        transcendentals=0,
        bytes_accessed=4 * (N * rows * lanes + rows * lanes + N * lanes),
    )

    out_flat = pl.pallas_call(
        imagemap_kernel,
        out_shape=jax.ShapeDtypeStruct((N, rows, lanes), jnp.int32),
        grid=grid,
        in_specs=[
            pl.BlockSpec(memory_space=pltpu.SMEM),                    # scale (1,)
            pl.BlockSpec((bn, 1, lanes), lambda j, n: (n, 0, 0)),     # bias  (N,1,L)
            pl.BlockSpec((tr, lanes), lambda j, n: (j, 0)),           # img   (R,L), const over n
        ],
        out_specs=pl.BlockSpec((bn, tr, lanes), lambda j, n: (n, j, 0)),
        compiler_params=pltpu.CompilerParams(
            dimension_semantics=("parallel", "parallel"),
            vmem_limit_bytes=vmem_limit),
        cost_estimate=cost,
    )(scale1, bias, img_rl)

    # (N, rows, lanes) int32 has exactly the (N, H, W, 2) byte layout (plus padded
    # tail) -> free reshape; slice off padding only when it was added.
    if padded_flat != flat:
        return out_flat.reshape(N, padded_flat)[:, :flat].reshape(N, H, W, C)
    return out_flat.reshape(N, H, W, C)


# --------------------------------------------------------------------------- main
if __name__ == "__main__":
    key = jax.random.PRNGKey(0)
    z_focal = 4.0
    sep = 0.5

    def run_case(H, W, N, case_key):
        k_img, k_nbr = jax.random.split(case_key)
        center_pixel = jnp.array([W / 2.0, H / 2.0], dtype=jnp.float32)      # (2,)
        f = jnp.array([2.0, 2.0], dtype=jnp.float32)                          # (2,)

        uu, vv = jnp.meshgrid(jnp.arange(W, dtype=jnp.float32),
                              jnp.arange(H, dtype=jnp.float32), indexing="xy")
        img = jnp.stack([uu, vv], axis=-1) + 0.1 * jax.random.normal(
            k_img, (H, W, 2), dtype=jnp.float32)                              # (H, W, 2)
        cam = jnp.array([1.5, -0.75, 1.0], dtype=jnp.float32)                 # (x, y, z)
        neighbors = 2.0 * jax.random.normal(k_nbr, (N, 2), dtype=jnp.float32)

        out = image_map_forward(img, cam, neighbors,
                                z_focal=z_focal, center_pixel=center_pixel,
                                f=f, sep=sep)
        out = jax.block_until_ready(out)

        assert out.shape == (N, H, W, 2), out.shape
        assert out.dtype == jnp.int32, out.dtype

        # Reference (PyTorch op order); <= 1 quantum slack for the folded-bias
        # FP op order / FMA differences.
        disparity = f * sep / z_focal
        d_ref = (neighbors - cam[None, :2]) * disparity[None, :]
        scale_ref = z_focal / (z_focal - cam[-1])
        ref = jnp.round(
            (img[None] + d_ref[:, None, None, :]
             - center_pixel[None, None, None, :]) * scale_ref
            + center_pixel[None, None, None, :]).astype(jnp.int32)
        assert int(jnp.max(jnp.abs(out - ref))) <= 1

    k1, k2 = jax.random.split(key)
    run_case(16, 16, 8, k1)   # padded lane-layout path (flat=512 -> 8x128 slab)
    run_case(16, 32, 8, k2)   # exact lane-dense factorization path (flat=1024)

    print("KERNEL_OK")
</pallas_src>

<mosaic_0001>
module attributes {stable_mosaic.version = 11 : i64} {
  func.func @imagemap_kernel(%arg0: i32, %arg1: i32, %arg2: memref<1xf32, #tpu.memory_space<smem>>, %arg3: memref<4x1x128xf32, #tpu.memory_space<vmem>>, %arg4: memref<8x128xf32, #tpu.memory_space<vmem>>, %arg5: memref<4x8x128xi32, #tpu.memory_space<vmem>>) attributes {dimension_semantics = [#tpu.dimension_semantics<parallel>, #tpu.dimension_semantics<parallel>], iteration_bounds = array<i64: 1, 2>, scalar_prefetch = 0 : i64, scratch_operands = 0 : i64, tpu.core_type = #tpu.core_type<tc>, window_params = [{transform_indices = @transform_0, window_bounds = array<i64: 1>}, {transform_indices = @transform_1, window_bounds = array<i64: 4, 1, 128>}, {transform_indices = @transform_2, window_bounds = array<i64: 8, 128>}, {transform_indices = @transform_3, window_bounds = array<i64: 4, 8, 128>}]} {
    %c0 = arith.constant 0 : index
    %0 = memref.load %arg2[%c0] : memref<1xf32, #tpu.memory_space<smem>>
    %c0_0 = arith.constant 0 : index
    %c0_1 = arith.constant 0 : index
    %1 = vector.load %arg4[%c0_0, %c0_1] : memref<8x128xf32, #tpu.memory_space<vmem>>, vector<8x128xf32>
    %2 = vector.broadcast %0 : f32 to vector<8x128xf32>
    %3 = arith.mulf %1, %2 : vector<8x128xf32>
    %4 = vector.shape_cast %3 : vector<8x128xf32> to vector<1x8x128xf32>
    %c0_2 = arith.constant 0 : index
    %c0_3 = arith.constant 0 : index
    %c0_4 = arith.constant 0 : index
    %5 = vector.load %arg3[%c0_2, %c0_3, %c0_4] : memref<4x1x128xf32, #tpu.memory_space<vmem>>, vector<4x1x128xf32>
    %6 = vector.broadcast %4 : vector<1x8x128xf32> to vector<4x8x128xf32>
    %7 = vector.broadcast %5 : vector<4x1x128xf32> to vector<4x8x128xf32>
    %8 = arith.addf %6, %7 : vector<4x8x128xf32>
    %9 = math.roundeven %8 : vector<4x8x128xf32>
    %10 = arith.fptosi %9 : vector<4x8x128xf32> to vector<4x8x128xi32>
    %c0_5 = arith.constant 0 : index
    %c0_6 = arith.constant 0 : index
    %c0_7 = arith.constant 0 : index
    %11 = vector.load %arg5[%c0_5, %c0_6, %c0_7] : memref<4x8x128xi32, #tpu.memory_space<vmem>>, vector<4x8x128xi32>
    tpu.vector_store %arg5[%c0_5, %c0_6, %c0_7], %10 {strides = array<i32>} : memref<4x8x128xi32, #tpu.memory_space<vmem>>, vector<4x8x128xi32>,
    return
  }
  func.func @transform_0(%arg0: i32, %arg1: i32) -> i32 {
    %c0_i32 = arith.constant 0 : i32
    %c0_i32_0 = arith.constant 0 : i32
    return %c0_i32 : i32
  }
  func.func @transform_1(%arg0: i32, %arg1: i32) -> (i32, i32, i32) {
    %c0_i32 = arith.constant 0 : i32
    %c0_i32_0 = arith.constant 0 : i32
    %c0_i32_1 = arith.constant 0 : i32
    return %arg1, %c0_i32, %c0_i32_0 : i32, i32, i32
  }
  func.func @transform_2(%arg0: i32, %arg1: i32) -> (i32, i32) {
    %c0_i32 = arith.constant 0 : i32
    %c0_i32_0 = arith.constant 0 : i32
    return %arg0, %c0_i32 : i32, i32
  }
  func.func @transform_3(%arg0: i32, %arg1: i32) -> (i32, i32, i32) {
    %c0_i32 = arith.constant 0 : i32
    %c0_i32_0 = arith.constant 0 : i32
    return %arg1, %arg0, %c0_i32 : i32, i32, i32
  }
}

</mosaic_0001>

<llo_original>
// kernel: tpu_custom_call.1
$region0: #{tpu_custom_call.1}
  #allocation0 [shape = 'u32[]', space=smem, size = 0x4, offset = 0x4, fixed_abs, tag = 'smem constant byte address 0x4 - core index']
  #allocation1 [shape = 'u32[144,128]{1,0:T(1,128)}', space=vmem, size = 0x12000, scoped, tag = 'internal scratch']
  #allocation2 [shape = 'f32[1]{0:T(128)S(6)}', space=smem, size = 0x200, scoped, tag = 'scoped memory for tpu_custom_call.1']
  %s0 = inlined_call_operand.<no memory space> [shape: f32[1], index: 0, kind: input, shape index: {}]
  %s1 = inlined_call_operand.hbm [shape: f32[8,1,128], index: 1, kind: input, shape index: {}]
  %s2 = inlined_call_operand.hbm [shape: f32[8,128], index: 2, kind: input, shape index: {}]
  %s3 = inlined_call_operand.hbm [shape: s32[8,8,128], index: 3, kind: output, shape index: {}]
  %s4 = sld [smem:[#allocation0]]
  $region53: #{tpu_custom_call.1} parent=0
    _
  %s6 = ssub.s32 1, %s4
  %s7 = scalar_select 0, %s6, %s4
  %8 = sst [smem:[#allocation2]] %s0
  $region1: #{tpu_custom_call.1} parent=0
    #allocation3 [shape = 'u8[4096]{0}', space=vmem, size = 0x1000, scoped, tag = 'input window, operand 1']
    #allocation4 [shape = 's32[2]{0}', space=sflag, size = 0x8, scoped, tag = 'scoped memory for tpu_custom_call.1']
    #allocation5 [shape = 's32[2]{0}', space=sflag, size = 0x8, scoped, tag = 'scoped memory for tpu_custom_call.1']
    #allocation6 [shape = 'u8[4096]{0}', space=vmem, size = 0x1000, scoped, tag = 'input window, operand 2, single buffered']
    #allocation7 [shape = 's32[1]{0}', space=sflag, size = 0x4, scoped, tag = 'scoped memory for tpu_custom_call.1']
    #allocation8 [shape = 'u8[32768]{0}', space=vmem, size = 0x8000, scoped, tag = 'output window, operand 0']
    %9 = vsyncpa [#allocation4], 0
    %s10 = scalar_lea.sflag [#allocation4], 1
    %11 = vsyncpa %s10, 0
    %12 = vsyncpa [#allocation7], 0
    %13 = vsyncpa [#allocation5], 0
    %s14 = scalar_lea.sflag [#allocation5], 1
    %15 = vsyncpa %s14, 0
    loop: start=0, step=1, limit=4
    $region2: #{tpu_custom_call.1} parent=1 // loop_pre_header
      _
    $region3: #{tpu_custom_call.1} parent=1 // loop_header
      %s17 = sphi 0, %s21
      %p18 = scmp.ge.s32.totalorder %s17, 4
      %s24 = sphi 0, %s36
      %s25 = sphi 0, %s32
      %s26 = sphi 0, %s24
      %s27 = sphi 0, %s25
      %s28 = sphi 0, %s26
      %s29 = sphi 0, %s27
      %s37 = sphi 0, %s37
      %s39 = sphi 0, %s37
      %s40 = sphi 0, %s39
      %s54 = sphi 0, %s40
      %s60 = sphi 0, %s62
      %s63 = sphi 0, %s60
      %s64 = sphi 0, %s63
      %s80 = sphi 0, %s64
      %s86 = sphi 0, %s88
      %s89 = sphi 0, %s86
      %s90 = sphi 0, %s89
      %s106 = sphi 0, %s90
      %s114 = sphi 0, %s116
      %s117 = sphi 0, %s114
      %s118 = sphi 0, %s117
      %s134 = sphi 0, %s118
    $region4: #{tpu_custom_call.1} parent=1 // loop_header_branch
      %20 = sbr.rel (%p18) target = $region8
    $region5: #{tpu_custom_call.1} parent=1 // loop_body
      %s22 = ssub.s32 %s17, 1
      %s23 = ssub.s32 %s17, 2
      %s30 = sadd.s32 1, %s25
      %p31 = scmp.ge.s32.totalorder %s30, 2
      %s32 = scalar_select %p31, 0, %s30
      %s33 = sadd.s32 1, %s24
      %s34 = scalar_select %p31, %s33, %s24
      %p35 = scmp.ge.s32.totalorder %s34, 1
      %s36 = scalar_select %p35, 0, %s34
      %s38 = sadd.s32 %s37, 1
      %p41 = scmp.eq.s32.totalorder %s17, 1
      %p42 = scmp.ne.s32.totalorder %s37, %s39
      %p43 = scmp.eq.s32.totalorder %s17, 0
      %p44 = por %p42, %p43
      %p45 = scmp.ne.s32.totalorder %s37, %s39
      %p46 = scmp.eq.s32.totalorder %s22, 1
      %p47 = por %p45, %p46
      %p48 = scmp.ne.s32.totalorder %s39, %s40
      %p49 = scmp.eq.s32.totalorder %s22, 0
      %p50 = por %p48, %p49
      %p51 = scmp.ne.s32.totalorder %s39, %s40
      %p52 = scmp.eq.s32.totalorder %s23, 1
      %p53 = por %p51, %p52
      %p55 = scmp.ne.s32.totalorder %s40, %s54
      %p56 = scmp.eq.s32.totalorder %s23, 0
      %p57 = por %p55, %p56
      %s58 = ssub.s32 %s25, %s32
      %p59 = scmp.eq.s32.totalorder %s58, 0
      %s61 = sadd.s32 %s60, 1
      %s62 = scalar_select %p59, %s60, %s61
      %p65 = pneg %p59
      %p66 = scmp.eq.s32.totalorder %s17, 1
      %p67 = por %p65, %p66
      %p68 = scmp.ne.s32.totalorder %s60, %s63
      %p69 = scmp.eq.s32.totalorder %s17, 0
      %p70 = por %p68, %p69
      %p71 = scmp.ne.s32.totalorder %s60, %s63
      %p72 = scmp.eq.s32.totalorder %s22, 1
      %p73 = por %p71, %p72
      %p74 = scmp.ne.s32.totalorder %s63, %s64
      %p75 = scmp.eq.s32.totalorder %s22, 0
      %p76 = por %p74, %p75
      %p77 = scmp.ne.s32.totalorder %s63, %s64
      %p78 = scmp.eq.s32.totalorder %s23, 1
      %p79 = por %p77, %p78
      %p81 = scmp.ne.s32.totalorder %s64, %s80
      %p82 = scmp.eq.s32.totalorder %s23, 0
      %p83 = por %p81, %p82
      %s84 = ssub.s32 %s24, %s36
      %p85 = scmp.eq.s32.totalorder %s84, 0
      %s87 = sadd.s32 %s86, 1
      %s88 = scalar_select %p85, %s86, %s87
      %p91 = pneg %p85
      %p92 = scmp.eq.s32.totalorder %s17, 1
      %p93 = por %p91, %p92
      %p94 = scmp.ne.s32.totalorder %s86, %s89
      %p95 = scmp.eq.s32.totalorder %s17, 0
      %p96 = por %p94, %p95
      %p97 = scmp.ne.s32.totalorder %s86, %s89
      %p98 = scmp.eq.s32.totalorder %s22, 1
      %p99 = por %p97, %p98
      %p100 = scmp.ne.s32.totalorder %s89, %s90
      %p101 = scmp.eq.s32.totalorder %s22, 0
      %p102 = por %p100, %p101
      %p103 = scmp.ne.s32.totalorder %s89, %s90
      %p104 = scmp.eq.s32.totalorder %s23, 1
      %p105 = por %p103, %p104
      %p107 = scmp.ne.s32.totalorder %s90, %s106
      %p108 = scmp.eq.s32.totalorder %s23, 0
      %p109 = por %p107, %p108
      %s110 = ssub.s32 %s25, %s32
      %s111 = ssub.s32 %s24, %s36
      %s112 = sor.u32 %s110, %s111
      %p113 = scmp.eq.s32.totalorder %s112, 0
      %s115 = sadd.s32 %s114, 1
      %s116 = scalar_select %p113, %s114, %s115
      %p119 = pneg %p113
      %p120 = scmp.eq.s32.totalorder %s17, 1
      %p121 = por %p119, %p120
      %p122 = scmp.ne.s32.totalorder %s114, %s117
      %p123 = scmp.eq.s32.totalorder %s17, 0
      %p124 = por %p122, %p123
      %p125 = scmp.ne.s32.totalorder %s114, %s117
      %p126 = scmp.eq.s32.totalorder %s22, 1
      %p127 = por %p125, %p126
      %p128 = scmp.ne.s32.totalorder %s117, %s118
      %p129 = scmp.eq.s32.totalorder %s22, 0
      %p130 = por %p128, %p129
      %p131 = scmp.ne.s32.totalorder %s117, %s118
      %p132 = scmp.eq.s32.totalorder %s23, 1
      %p133 = por %p131, %p132
      %p135 = scmp.ne.s32.totalorder %s118, %s134
      %p136 = scmp.eq.s32.totalorder %s23, 0
      %p137 = por %p135, %p136
      %p138 = scmp.le.s32.totalorder 1, %s17
      %p139 = scmp.lt.s32.totalorder %s17, 3
      %p140 = pnand %p138, %p139
      %p141 = pneg %p140
      // Predicated region
      $region9: #{tpu_custom_call.1} parent=5 // pred_check
        _
      $region10: #{tpu_custom_call.1} parent=5 // pred_check_branch
        %143 = sbr.rel (%p140) target = $region12
      $region11: #{tpu_custom_call.1} parent=5 // pred_region
        %s144 = ssub.s32 %s17, 1
        // Predicated region
        $region13: #{tpu_custom_call.1} parent=11 // pred_check
          %p145 = pneg %p50
        $region14: #{tpu_custom_call.1} parent=11 // pred_check_branch
          %147 = sbr.rel (%p145) target = $region16
        $region15: #{tpu_custom_call.1} parent=11 // pred_region
          _
        $region16: #{tpu_custom_call.1} parent=11 // pred_fallthru
          _
        // Predicated region
        $region17: #{tpu_custom_call.1} parent=11 // pred_check
          %p148 = pneg %p102
        $region18: #{tpu_custom_call.1} parent=11 // pred_check_branch
          %150 = sbr.rel (%p148) target = $region20
        $region19: #{tpu_custom_call.1} parent=11 // pred_region
          %s152 = ssub.s32 128, 128
          %153 = vsyncadd [#allocation7], %s152
          %s154 = smul.addr %s26, 128
          %s155 = scalar_lea.hbm %s2, %s154
          %s157 = sshll.u32 [#allocation6], 4
          %s158 = int_to_ptr.vmem [resolvable:$true] %s157
          %160 = dma.hbm_to_vmem [thread:$0]  %s155, 128, %s158, [#allocation7]
        $region20: #{tpu_custom_call.1} parent=11 // pred_fallthru
          _
      $region12: #{tpu_custom_call.1} parent=5 // pred_fallthru
        _
      %p161 = scmp.lt.s32.totalorder %s17, 2
      // Predicated region
      $region21: #{tpu_custom_call.1} parent=5 // pred_check
        %p162 = pneg %p161
      $region22: #{tpu_custom_call.1} parent=5 // pred_check_branch
        %164 = sbr.rel (%p162) target = $region24
      $region23: #{tpu_custom_call.1} parent=5 // pred_region
        // Predicated region
        $region25: #{tpu_custom_call.1} parent=23 // pred_check
          %p165 = pneg %p70
        $region26: #{tpu_custom_call.1} parent=23 // pred_check_branch
          %167 = sbr.rel (%p165) target = $region28
        $region27: #{tpu_custom_call.1} parent=23 // pred_region
          %s168 = sand.u32 %s60, 1
          %s169 = scalar_lea.sflag [#allocation4], %s168
          %s170 = sand.u32 %s60, 1
          %s171 = smul.addr %s170, 4
          %s172 = scalar_lea.vmem [#allocation3], %s171
          %s173 = smul.u32 4, %s25
          %s175 = ssub.s32 64, 64
          %176 = vsyncadd %s169, %s175
          %s177 = smul.addr %s173, 16
          %s178 = scalar_lea.hbm %s1, %s177
          %s179 = sshll.u32 %s172, 4
          %s180 = int_to_ptr.vmem [resolvable:$true] %s179
          %185 = dma.hbm_to_vmem [thread:$0]  %s178, 64, %s180, %s169, 16, 16, 1
        $region28: #{tpu_custom_call.1} parent=23 // pred_fallthru
          _
      $region24: #{tpu_custom_call.1} parent=5 // pred_fallthru
        _
      %p186 = scmp.le.s32.totalorder 1, %s17
      %p187 = scmp.lt.s32.totalorder %s17, 3
      %p188 = pnand %p186, %p187
      %p189 = pneg %p188
      // Predicated region
      $region29: #{tpu_custom_call.1} parent=5 // pred_check
        _
      $region30: #{tpu_custom_call.1} parent=5 // pred_check_branch
        %191 = sbr.rel (%p188) target = $region32
      $region31: #{tpu_custom_call.1} parent=5 // pred_region
        %s192 = ssub.s32 %s17, 1
        %s193 = sand.u32 %s63, 1
        %s194 = scalar_lea.sflag [#allocation4], %s193
        %s195 = sand.u32 %s63, 1
        %s196 = smul.addr %s195, 4
        %s197 = scalar_lea.vmem [#allocation3], %s196
        // Predicated region
        $region33: #{tpu_custom_call.1} parent=31 // pred_check
          %p198 = pneg %p76
        $region34: #{tpu_custom_call.1} parent=31 // pred_check_branch
          %200 = sbr.rel (%p198) target = $region36
        $region35: #{tpu_custom_call.1} parent=31 // pred_region
          %201 = dma.done %s194, 64
        $region36: #{tpu_custom_call.1} parent=31 // pred_fallthru
          _
        // Predicated region
        $region37: #{tpu_custom_call.1} parent=31 // pred_check
          %p202 = pneg %p102
        $region38: #{tpu_custom_call.1} parent=31 // pred_check_branch
          %204 = sbr.rel (%p202) target = $region40
        $region39: #{tpu_custom_call.1} parent=31 // pred_region
          %205 = dma.done [#allocation7], 128
        $region40: #{tpu_custom_call.1} parent=31 // pred_fallthru
          _
        %p206 = pneg %p50
        %p207 = pneg %p47
        %s208 = sand.u32 %s63, 1
        %s209 = scalar_lea.sflag [#allocation4], %s208
        %s210 = sand.u32 %s63, 1
        %s211 = smul.addr %s210, 4
        %s212 = scalar_lea.vmem [#allocation3], %s211
        %p213 = pneg %p76
        %p214 = pneg %p73
        %p215 = pneg %p102
        %p216 = pneg %p99
        %p217 = pneg %p130
        %p218 = pneg %p127
        %s219 = sand.u32 %s117, 1
        %s220 = scalar_lea.sflag [#allocation5], %s219
        %s221 = sand.u32 %s117, 1
        %s222 = smul.addr %s221, 32
        %s223 = scalar_lea.vmem [#allocation8], %s222
        %s224 = smul.u32 4, %s27
        %s225 = smul.u32 4, %s27
        %s226 = sld [smem:[#allocation2]]
        %v227 = vld [vmem:[#allocation6] sm:$0xff]
        %v228 = vstv %s226
        %v229 = vmul.f32 %v227, %v228
        %v230 = vld [vmem:[%s197] sm:$0x1]
        %v231 = vld [vmem:[%s197 + $0x1] sm:$0x1]
        %v232 = vld [vmem:[%s197 + $0x2] sm:$0x1]
        %v233 = vld [vmem:[%s197 + $0x3] sm:$0x1]
        %v238 = vlaneseq
        %v239 = vshrl.u32 %v238, 7
        %v240 = vsub.s32 0, %v239
        %v241 = vrot.slane %v230, %v240
        %v242 = vlaneseq
        %v243 = vshrl.u32 %v242, 7
        %v244 = vsub.s32 0, %v243
        %v245 = vrot.slane %v231, %v244
        %v246 = vlaneseq
        %v247 = vshrl.u32 %v246, 7
        %v248 = vsub.s32 0, %v247
        %v249 = vrot.slane %v232, %v248
        %v250 = vlaneseq
        %v251 = vshrl.u32 %v250, 7
        %v252 = vsub.s32 0, %v251
        %v253 = vrot.slane %v233, %v252
        %v258 = vadd.f32 %v229, %v241
        %v259 = vadd.f32 %v229, %v245
        %v260 = vadd.f32 %v229, %v249
        %v261 = vadd.f32 %v229, %v253
        %v262 = vcvt.f32.s32.ties.to.even %v258
        %v263 = vcvt.f32.s32.ties.to.even %v259
        %v264 = vcvt.f32.s32.ties.to.even %v260
        %v265 = vcvt.f32.s32.ties.to.even %v261
        %266 = vst [vmem:[%s223] sm:$0xff] %v262
        %267 = vst [vmem:[%s223 + $0x8] sm:$0xff] %v263
        %268 = vst [vmem:[%s223 + $0x10] sm:$0xff] %v264
        %269 = vst [vmem:[%s223 + $0x18] sm:$0xff] %v265
        %s270 = sand.u32 %s117, 1
        %s271 = scalar_lea.sflag [#allocation5], %s270
        %s272 = sand.u32 %s117, 1
        %s273 = smul.addr %s272, 32
        %s274 = scalar_lea.vmem [#allocation8], %s273
        // Predicated region
        $region41: #{tpu_custom_call.1} parent=31 // pred_check
          %p275 = pneg %p127
        $region42: #{tpu_custom_call.1} parent=31 // pred_check_branch
          %277 = sbr.rel (%p275) target = $region44
        $region43: #{tpu_custom_call.1} parent=31 // pred_region
          %s278 = smul.u32 4, %s27
          %s280 = ssub.s32 512, 512
          %281 = vsyncadd %s271, %s280
          %s282 = sadd.s32 %s26, %s278
          %s283 = smul.addr %s282, 128
          %s284 = scalar_lea.hbm %s3, %s283
          %s285 = sshll.u32 %s274, 4
          %s286 = int_to_ptr.vmem [resolvable:$true] %s285
          %291 = dma.vmem_to_hbm [thread:$0]  %s286, 512, %s284, %s271, 128, 128, 8
        $region44: #{tpu_custom_call.1} parent=31 // pred_fallthru
          _
      $region32: #{tpu_custom_call.1} parent=5 // pred_fallthru
        _
      %p292 = scmp.le.s32.totalorder 2, %s17
      // Predicated region
      $region45: #{tpu_custom_call.1} parent=5 // pred_check
        %p293 = pneg %p292
      $region46: #{tpu_custom_call.1} parent=5 // pred_check_branch
        %295 = sbr.rel (%p293) target = $region48
      $region47: #{tpu_custom_call.1} parent=5 // pred_region
        %s296 = ssub.s32 %s17, 2
        // Predicated region
        $region49: #{tpu_custom_call.1} parent=47 // pred_check
          %p297 = pneg %p133
        $region50: #{tpu_custom_call.1} parent=47 // pred_check_branch
          %299 = sbr.rel (%p297) target = $region52
        $region51: #{tpu_custom_call.1} parent=47 // pred_region
          %s300 = sand.u32 %s118, 1
          %s301 = scalar_lea.sflag [#allocation5], %s300
          %s302 = sand.u32 %s118, 1
          %s303 = smul.addr %s302, 32
          %s304 = scalar_lea.vmem [#allocation8], %s303
          %305 = dma.done %s301, 512
        $region52: #{tpu_custom_call.1} parent=47 // pred_fallthru
          _
      $region48: #{tpu_custom_call.1} parent=5 // pred_fallthru
        _
    $region6: #{tpu_custom_call.1} parent=1 // loop_footer
      %s21 = sadd.s32 1, %s17
    $region7: #{tpu_custom_call.1} parent=1 // loop_footer_branch
      %16 = sbr.rel target = $region3
    $region8: #{tpu_custom_call.1} parent=1 // loop_exit
      _
    %306 = vsyncpa [#allocation4], 1
    %s307 = scalar_lea.sflag [#allocation4], 1
    %308 = vsyncpa %s307, 1
    %309 = vsyncpa [#allocation7], 1
    %310 = vsyncpa [#allocation5], 1
    %s311 = scalar_lea.sflag [#allocation5], 1
    %312 = vsyncpa %s311, 1

</llo_original>
